<compile_context>
chip_gen: v7x
topology: tpu7x:2x2x1
jax: 0.10.0
libtpu: 0.0.40
codegen_flags: <defaults>
</compile_context>

<pallas_src>
from typing import NamedTuple, Optional

import jax
import jax.numpy as jnp
from jax.experimental import pallas as pl
from jax.experimental.pallas import tpu as pltpu

_MIB = 1024 * 1024


def _round_up(x, m):
    return (x + m - 1) // m * m


def _cdiv(a, b):
    return -(-a // b)


def _tpu_generation() -> str:
    try:
        kind = jax.devices()[0].device_kind.lower()
    except Exception:
        return "unknown"
    for tag in ("v7", "v6", "v5", "v4"):
        if tag in kind:
            return tag
    return "unknown"


def _vmem_budget_bytes() -> int:
    """Physical per-core VMEM minus ~15% headroom for compiler internals."""
    cap = None
    try:
        cap = int(pltpu.get_tpu_info().vmem_capacity_bytes)
    except Exception:
        cap = None
    if not cap or cap <= 0:
        cap = 64 * _MIB if _tpu_generation() == "v7" else 128 * _MIB
    return int(cap * 0.85)


# Generation-aware (row tile, hidden reduction tile) defaults, sized so the
# weight re-streaming per row tile stays above each chip's FLOPs/HBM ratio.
_GEN_TILES = {
    "v7": (512, 256),
    "v6": (768, 512),
    "v5": (256, 512),
    "v4": (256, 512),
    "unknown": (256, 512),
}


def _swiglu_mlp_kernel(x_ref, w_ref, v_ref, w2_ref, o_ref, acc_ref):
    # x_ref : (tm, Dp)   row tile (same block across the H axis)
    # w_ref : (Dp, th)   W^T tile for this H slice
    # v_ref : (Dp, th)   V^T tile for this H slice
    # w2_ref: (th, Dp)   W_2^T tile for this H slice
    # o_ref : (tm, Dp)   output row tile (same block across the H axis)
    # acc_ref: (tm, Dp)  f32 accumulator scratch
    k = pl.program_id(1)

    @pl.when(k == 0)
    def _init():
        acc_ref[...] = jnp.zeros_like(acc_ref)

    x = x_ref[...]
    h_w = jnp.dot(x, w_ref[...], preferred_element_type=jnp.float32)
    h_v = jnp.dot(x, v_ref[...], preferred_element_type=jnp.float32)
    # SwiGLU gating in f32 on the (tm, th) tile.
    gated = (h_w * jax.nn.sigmoid(h_w)) * h_v
    acc_ref[...] += jnp.dot(gated.astype(w2_ref.dtype), w2_ref[...],
                            preferred_element_type=jnp.float32)

    @pl.when(k == pl.num_programs(1) - 1)
    def _finalize():
        o_ref[...] = acc_ref[...].astype(o_ref.dtype)


class PreparedWeights(NamedTuple):
    w_t: jax.Array    # (D_pad, H_pad) = W.T  zero-padded
    v_t: jax.Array    # (D_pad, H_pad) = V.T  zero-padded
    w2_t: jax.Array   # (H_pad, D_pad) = W_2.T zero-padded
    D: int
    H: int
    th: int


def prepare_swiglu_weights(W, V, W2, *, th: Optional[int] = None, dtype=None):
    """One-time weight preparation (transpose + lane-align zero padding).

    Hoist this out of the hot path: the returned PreparedWeights can be reused
    for every forward call, removing O(3*D*H) per-call HBM traffic.
    Zero padding is mathematically inert (silu(0)*0 = 0, zero rows/cols add 0).
    """
    H, D = W.shape
    assert V.shape == (H, D) and W2.shape == (D, H), "weight shape mismatch"
    dtype = dtype or W.dtype
    if th is None:
        th = _GEN_TILES[_tpu_generation()][1]
    th = max(128, min(_round_up(th, 128), _round_up(H, 128)))
    D_pad = _round_up(D, 128)
    H_pad = _round_up(H, th)
    w_t = jnp.pad(W.T.astype(dtype), ((0, D_pad - D), (0, H_pad - H)))
    v_t = jnp.pad(V.T.astype(dtype), ((0, D_pad - D), (0, H_pad - H)))
    w2_t = jnp.pad(W2.T.astype(dtype), ((0, H_pad - H), (0, D_pad - D)))
    return PreparedWeights(w_t, v_t, w2_t, D, H, th)


def _vmem_footprint(tm, th, Dp, x_itemsize, w_itemsize):
    return (1 * tm * Dp * x_itemsize        # x block (single-buffered; k-invariant)
            + 4 * Dp * th * w_itemsize      # W & V blocks (double-buffered each)
            + 2 * th * Dp * w_itemsize      # W2 block (double-buffered)
            + 2 * tm * Dp * x_itemsize      # output block (double-buffered)
            + tm * Dp * 4                   # f32 accumulator scratch
            + 3 * tm * th * 4)              # f32 gating intermediates


def swiglu_mlp_prepared(x, prep: PreparedWeights, *, tm: Optional[int] = None):
    """SwiGLU MLP forward using pre-transposed/padded weights."""
    orig_shape = x.shape
    D, H = prep.D, prep.H
    assert orig_shape[-1] == D, "input feature dim does not match weights"
    x2d = x.reshape(-1, D)
    M = x2d.shape[0]
    out_dtype = x.dtype
    w_dtype = prep.w_t.dtype
    x_itemsize = jnp.dtype(out_dtype).itemsize
    w_itemsize = jnp.dtype(w_dtype).itemsize

    D_pad, H_pad = prep.w_t.shape

    gen = _tpu_generation()
    num_tc = 2 if gen == "v7" else 1
    tm_req = tm if tm is not None else _GEN_TILES[gen][0]

    # Balanced row tiling: bound pad waste, and on v7x give both TensorCores
    # at least one row tile when M allows (small-M / decode case).
    n_row_tiles = max(_cdiv(M, max(tm_req, 16)), 1)
    if num_tc > 1 and n_row_tiles < num_tc and M >= num_tc * 16:
        n_row_tiles = num_tc
    rows_per_tile = _cdiv(M, n_row_tiles)
    row_align = 128 if rows_per_tile >= 128 else 16
    tm_eff = max(16, _round_up(rows_per_tile, row_align))

    # Shrink the hidden tile (keeps total DMA volume; only step count grows),
    # then the row tile, until double-buffered tiles fit the VMEM budget.
    th_eff = prep.th
    budget = _vmem_budget_bytes()
    while (_vmem_footprint(tm_eff, th_eff, D_pad, x_itemsize, w_itemsize) > budget
           and th_eff > 128 and (th_eff // 2) % 128 == 0):
        th_eff //= 2
    while (_vmem_footprint(tm_eff, th_eff, D_pad, x_itemsize, w_itemsize) > budget
           and tm_eff > 16):
        tm_eff = max(16, _round_up(tm_eff // 2, 16))

    M_pad = _round_up(M, tm_eff)
    x_p = jnp.pad(x2d.astype(w_dtype) if x2d.dtype != w_dtype else x2d,
                  ((0, M_pad - M), (0, D_pad - D)))

    grid = (M_pad // tm_eff, H_pad // th_eff)

    # Advisory cost estimate: weights are re-streamed once per row tile.
    weight_bytes = 3 * D_pad * H_pad * w_itemsize
    bytes_accessed = (grid[0] * weight_bytes
                      + M_pad * D_pad * x_itemsize     # x read
                      + M_pad * D_pad * x_itemsize)    # out write
    cost = pl.CostEstimate(
        flops=6 * M_pad * D_pad * H_pad,
        transcendentals=M_pad * H_pad,
        bytes_accessed=bytes_accessed,
    )

    footprint = _vmem_footprint(tm_eff, th_eff, D_pad, x_itemsize, w_itemsize)
    vmem_limit = int(min(max(int(footprint * 1.5), 32 * _MIB), budget))

    def _call(buffered_x: bool):
        if buffered_x:
            # x block index (i, 0) is invariant across the k reduction axis,
            # so a single buffer suffices — saves tm*D_pad of VMEM.
            x_spec = pl.BlockSpec((tm_eff, D_pad), lambda i, k: (i, 0),
                                  pipeline_mode=pl.Buffered(1))
        else:
            x_spec = pl.BlockSpec((tm_eff, D_pad), lambda i, k: (i, 0))
        return pl.pallas_call(
            _swiglu_mlp_kernel,
            out_shape=jax.ShapeDtypeStruct((M_pad, D_pad), out_dtype),
            grid_spec=pltpu.PrefetchScalarGridSpec(
                num_scalar_prefetch=0,
                grid=grid,
                in_specs=[
                    x_spec,                                                # x rows
                    pl.BlockSpec((D_pad, th_eff), lambda i, k: (0, k)),    # W^T tile
                    pl.BlockSpec((D_pad, th_eff), lambda i, k: (0, k)),    # V^T tile
                    pl.BlockSpec((th_eff, D_pad), lambda i, k: (k, 0)),    # W2^T tile
                ],
                out_specs=pl.BlockSpec((tm_eff, D_pad), lambda i, k: (i, 0)),
                scratch_shapes=[pltpu.VMEM((tm_eff, D_pad), jnp.float32)],
            ),
            compiler_params=pltpu.CompilerParams(
                dimension_semantics=("parallel", "arbitrary"),
                vmem_limit_bytes=vmem_limit,
            ),
            cost_estimate=cost,
        )(x_p, prep.w_t, prep.v_t, prep.w2_t)

    try:
        out = _call(True)
    except Exception:
        # Fallback if this Pallas version rejects single-buffered pipeline_mode.
        out = _call(False)

    return out[:M, :D].astype(out_dtype).reshape(orig_shape)


def swiglu_mlp(x, W, V, W2, *, tm=None, th=None):
    """Convenience wrapper taking PyTorch-layout weights (prepares per call).

    For production, call prepare_swiglu_weights() once and reuse the result
    with swiglu_mlp_prepared() to avoid per-call transpose/pad HBM traffic.
    """
    prep = prepare_swiglu_weights(W, V, W2, th=th, dtype=x.dtype)
    return swiglu_mlp_prepared(x, prep, tm=tm)


def init_params(key, embedding_dim, embedding_hidden_dim, dtype=jnp.float32):
    """Deterministic init mimicking torch.nn.Linear(bias=False) default
    (uniform +-1/sqrt(fan_in)). Weights stored PyTorch-style (out, in)."""
    k_w, k_v, k_w2 = jax.random.split(key, 3)
    bound_in = 1.0 / (embedding_dim ** 0.5)
    bound_hid = 1.0 / (embedding_hidden_dim ** 0.5)
    W = jax.random.uniform(k_w, (embedding_hidden_dim, embedding_dim),
                           dtype, -bound_in, bound_in)
    V = jax.random.uniform(k_v, (embedding_hidden_dim, embedding_dim),
                           dtype, -bound_in, bound_in)
    W2 = jax.random.uniform(k_w2, (embedding_dim, embedding_hidden_dim),
                            dtype, -bound_hid, bound_hid)
    return W, V, W2


def reference_mlp(x, W, V, W2):
    h = x @ W.T
    g = (h * jax.nn.sigmoid(h)) * (x @ V.T)
    return g @ W2.T


if __name__ == "__main__":
    key = jax.random.PRNGKey(0)
    batch, seq = 2, 8
    embedding_dim, embedding_hidden_dim = 32, 64

    k_x, k_p = jax.random.split(key)
    x = jax.random.normal(k_x, (batch, seq, embedding_dim), jnp.float32)
    W, V, W2 = init_params(k_p, embedding_dim, embedding_hidden_dim)

    # f32 correctness check (small shapes exercise the padding path).
    out = jax.block_until_ready(swiglu_mlp(x, W, V, W2))
    ref = reference_mlp(x, W, V, W2)
    assert out.shape == x.shape
    assert jnp.allclose(out, ref, atol=2e-5, rtol=2e-5), "f32 mismatch vs reference"

    # bf16 production path: weights prepared ONCE, reused across calls.
    xb = x.astype(jnp.bfloat16)
    prep_bf16 = prepare_swiglu_weights(W.astype(jnp.bfloat16),
                                       V.astype(jnp.bfloat16),
                                       W2.astype(jnp.bfloat16))
    out_bf16 = jax.block_until_ready(swiglu_mlp_prepared(xb, prep_bf16))
    out_bf16 = jax.block_until_ready(swiglu_mlp_prepared(xb, prep_bf16))  # reuse
    assert out_bf16.shape == x.shape
    max_err = float(jnp.max(jnp.abs(out_bf16.astype(jnp.float32) - ref)))
    assert max_err < 0.1, f"bf16 mismatch vs f32 reference: {max_err}"

    print("KERNEL_OK")
</pallas_src>

<mosaic_0001>
module attributes {stable_mosaic.version = 11 : i64} {
  func.func @_swiglu_mlp_kernel(%arg0: i32, %arg1: i32, %arg2: memref<16x128xf32, #tpu.memory_space<vmem>>, %arg3: memref<128x128xf32, #tpu.memory_space<vmem>>, %arg4: memref<128x128xf32, #tpu.memory_space<vmem>>, %arg5: memref<128x128xf32, #tpu.memory_space<vmem>>, %arg6: memref<16x128xf32, #tpu.memory_space<vmem>>, %arg7: memref<16x128xf32, #tpu.memory_space<vmem>>) attributes {dimension_semantics = [#tpu.dimension_semantics<parallel>, #tpu.dimension_semantics<arbitrary>], iteration_bounds = array<i64: 1, 1>, scalar_prefetch = 0 : i64, scratch_operands = 1 : i64, tpu.core_type = #tpu.core_type<tc>, window_params = [{pipeline_mode = #tpu.pipeline_mode<synchronous>, transform_indices = @transform_0, window_bounds = array<i64: 16, 128>}, {transform_indices = @transform_1, window_bounds = array<i64: 128, 128>}, {transform_indices = @transform_2, window_bounds = array<i64: 128, 128>}, {transform_indices = @transform_3, window_bounds = array<i64: 128, 128>}, {transform_indices = @transform_4, window_bounds = array<i64: 16, 128>}]} {
    %c0_i32 = arith.constant 0 : i32
    %0 = arith.cmpi eq, %arg1, %c0_i32 : i32
    %1 = arith.extui %0 : i1 to i32
    %c0_i32_0 = arith.constant 0 : i32
    %2 = arith.cmpi ne, %1, %c0_i32_0 : i32
    scf.if %2 {
      %cst_17 = arith.constant 0.000000e+00 : f32
      %23 = vector.broadcast %cst_17 : f32 to vector<16x128xf32>
      %c0_18 = arith.constant 0 : index
      %c0_19 = arith.constant 0 : index
      %24 = vector.load %arg7[%c0_18, %c0_19] : memref<16x128xf32, #tpu.memory_space<vmem>>, vector<16x128xf32>
      tpu.vector_store %arg7[%c0_18, %c0_19], %23 {strides = array<i32>} : memref<16x128xf32, #tpu.memory_space<vmem>>, vector<16x128xf32>,
    } else {
    }
    %c0 = arith.constant 0 : index
    %c0_1 = arith.constant 0 : index
    %3 = vector.load %arg2[%c0, %c0_1] : memref<16x128xf32, #tpu.memory_space<vmem>>, vector<16x128xf32>
    %c0_2 = arith.constant 0 : index
    %c0_3 = arith.constant 0 : index
    %4 = vector.load %arg3[%c0_2, %c0_3] : memref<128x128xf32, #tpu.memory_space<vmem>>, vector<128x128xf32>
    %cst = arith.constant dense<0.000000e+00> : vector<16x128xf32>
    %5 = tpu.matmul %3, %4, %cst {dimension_numbers = #tpu.dot_dimension_numbers<[1], [0], [0], [1], [0, 0, 1, 1], [], []>} : vector<16x128xf32>, vector<128x128xf32>, vector<16x128xf32> -> vector<16x128xf32>
    %c0_4 = arith.constant 0 : index
    %c0_5 = arith.constant 0 : index
    %6 = vector.load %arg4[%c0_4, %c0_5] : memref<128x128xf32, #tpu.memory_space<vmem>>, vector<128x128xf32>
    %cst_6 = arith.constant dense<0.000000e+00> : vector<16x128xf32>
    %7 = tpu.matmul %3, %6, %cst_6 {dimension_numbers = #tpu.dot_dimension_numbers<[1], [0], [0], [1], [0, 0, 1, 1], [], []>} : vector<16x128xf32>, vector<128x128xf32>, vector<16x128xf32> -> vector<16x128xf32>
    %8 = arith.negf %5 : vector<16x128xf32>
    %9 = math.exp %8 : vector<16x128xf32>
    %cst_7 = arith.constant 1.000000e+00 : f32
    %10 = vector.broadcast %cst_7 : f32 to vector<16x128xf32>
    %11 = arith.addf %10, %9 : vector<16x128xf32>
    %12 = arith.divf %10, %11 : vector<16x128xf32>
    %13 = arith.mulf %5, %12 : vector<16x128xf32>
    %14 = arith.mulf %13, %7 : vector<16x128xf32>
    %c0_8 = arith.constant 0 : index
    %c0_9 = arith.constant 0 : index
    %15 = vector.load %arg7[%c0_8, %c0_9] : memref<16x128xf32, #tpu.memory_space<vmem>>, vector<16x128xf32>
    %c0_10 = arith.constant 0 : index
    %c0_11 = arith.constant 0 : index
    %16 = vector.load %arg5[%c0_10, %c0_11] : memref<128x128xf32, #tpu.memory_space<vmem>>, vector<128x128xf32>
    %cst_12 = arith.constant dense<0.000000e+00> : vector<16x128xf32>
    %17 = tpu.matmul %14, %16, %cst_12 {dimension_numbers = #tpu.dot_dimension_numbers<[1], [0], [0], [1], [0, 0, 1, 1], [], []>} : vector<16x128xf32>, vector<128x128xf32>, vector<16x128xf32> -> vector<16x128xf32>
    %18 = arith.addf %15, %17 : vector<16x128xf32>
    %c0_13 = arith.constant 0 : index
    %c0_14 = arith.constant 0 : index
    %19 = vector.load %arg7[%c0_13, %c0_14] : memref<16x128xf32, #tpu.memory_space<vmem>>, vector<16x128xf32>
    tpu.vector_store %arg7[%c0_13, %c0_14], %18 {strides = array<i32>} : memref<16x128xf32, #tpu.memory_space<vmem>>, vector<16x128xf32>,
    %c0_i32_15 = arith.constant 0 : i32
    %20 = arith.cmpi eq, %arg1, %c0_i32_15 : i32
    %21 = arith.extui %20 : i1 to i32
    %c0_i32_16 = arith.constant 0 : i32
    %22 = arith.cmpi ne, %21, %c0_i32_16 : i32
    scf.if %22 {
      %c0_17 = arith.constant 0 : index
      %c0_18 = arith.constant 0 : index
      %23 = vector.load %arg7[%c0_17, %c0_18] : memref<16x128xf32, #tpu.memory_space<vmem>>, vector<16x128xf32>
      %c0_19 = arith.constant 0 : index
      %c0_20 = arith.constant 0 : index
      %24 = vector.load %arg6[%c0_19, %c0_20] : memref<16x128xf32, #tpu.memory_space<vmem>>, vector<16x128xf32>
      tpu.vector_store %arg6[%c0_19, %c0_20], %23 {strides = array<i32>} : memref<16x128xf32, #tpu.memory_space<vmem>>, vector<16x128xf32>,
    } else {
    }
    return
  }
  func.func @transform_0(%arg0: i32, %arg1: i32) -> (i32, i32) {
    %c0_i32 = arith.constant 0 : i32
    %c0_i32_0 = arith.constant 0 : i32
    return %arg0, %c0_i32 : i32, i32
  }
  func.func @transform_1(%arg0: i32, %arg1: i32) -> (i32, i32) {
    %c0_i32 = arith.constant 0 : i32
    %c0_i32_0 = arith.constant 0 : i32
    return %c0_i32, %arg1 : i32, i32
  }
  func.func @transform_2(%arg0: i32, %arg1: i32) -> (i32, i32) {
    %c0_i32 = arith.constant 0 : i32
    %c0_i32_0 = arith.constant 0 : i32
    return %c0_i32, %arg1 : i32, i32
  }
  func.func @transform_3(%arg0: i32, %arg1: i32) -> (i32, i32) {
    %c0_i32 = arith.constant 0 : i32
    %c0_i32_0 = arith.constant 0 : i32
    return %arg1, %c0_i32 : i32, i32
  }
  func.func @transform_4(%arg0: i32, %arg1: i32) -> (i32, i32) {
    %c0_i32 = arith.constant 0 : i32
    %c0_i32_0 = arith.constant 0 : i32
    return %arg0, %c0_i32 : i32, i32
  }
}

module attributes {stable_mosaic.version = 11 : i64} {
  func.func @_swiglu_mlp_kernel(%arg0: i32, %arg1: i32, %arg2: memref<16x128xf32, #tpu.memory_space<vmem>>, %arg3: memref<128x128xf32, #tpu.memory_space<vmem>>, %arg4: memref<128x128xf32, #tpu.memory_space<vmem>>, %arg5: memref<128x128xf32, #tpu.memory_space<vmem>>, %arg6: memref<16x128xf32, #tpu.memory_space<vmem>>, %arg7: memref<16x128xf32, #tpu.memory_space<vmem>>) attributes {dimension_semantics = [#tpu.dimension_semantics<parallel>, #tpu.dimension_semantics<arbitrary>], iteration_bounds = array<i64: 1, 1>, scalar_prefetch = 0 : i64, scratch_operands = 1 : i64, tpu.core_type = #tpu.core_type<tc>, window_params = [{transform_indices = @transform_0, window_bounds = array<i64: 16, 128>}, {transform_indices = @transform_1, window_bounds = array<i64: 128, 128>}, {transform_indices = @transform_2, window_bounds = array<i64: 128, 128>}, {transform_indices = @transform_3, window_bounds = array<i64: 128, 128>}, {transform_indices = @transform_4, window_bounds = array<i64: 16, 128>}]} {
    %c0_i32 = arith.constant 0 : i32
    %0 = arith.cmpi eq, %arg1, %c0_i32 : i32
    %1 = arith.extui %0 : i1 to i32
    %c0_i32_0 = arith.constant 0 : i32
    %2 = arith.cmpi ne, %1, %c0_i32_0 : i32
    scf.if %2 {
      %cst_17 = arith.constant 0.000000e+00 : f32
      %23 = vector.broadcast %cst_17 : f32 to vector<16x128xf32>
      %c0_18 = arith.constant 0 : index
      %c0_19 = arith.constant 0 : index
      %24 = vector.load %arg7[%c0_18, %c0_19] : memref<16x128xf32, #tpu.memory_space<vmem>>, vector<16x128xf32>
      tpu.vector_store %arg7[%c0_18, %c0_19], %23 {strides = array<i32>} : memref<16x128xf32, #tpu.memory_space<vmem>>, vector<16x128xf32>,
    } else {
    }
    %c0 = arith.constant 0 : index
    %c0_1 = arith.constant 0 : index
    %3 = vector.load %arg2[%c0, %c0_1] : memref<16x128xf32, #tpu.memory_space<vmem>>, vector<16x128xf32>
    %c0_2 = arith.constant 0 : index
    %c0_3 = arith.constant 0 : index
    %4 = vector.load %arg3[%c0_2, %c0_3] : memref<128x128xf32, #tpu.memory_space<vmem>>, vector<128x128xf32>
    %cst = arith.constant dense<0.000000e+00> : vector<16x128xf32>
    %5 = tpu.matmul %3, %4, %cst {dimension_numbers = #tpu.dot_dimension_numbers<[1], [0], [0], [1], [0, 0, 1, 1], [], []>} : vector<16x128xf32>, vector<128x128xf32>, vector<16x128xf32> -> vector<16x128xf32>
    %c0_4 = arith.constant 0 : index
    %c0_5 = arith.constant 0 : index
    %6 = vector.load %arg4[%c0_4, %c0_5] : memref<128x128xf32, #tpu.memory_space<vmem>>, vector<128x128xf32>
    %cst_6 = arith.constant dense<0.000000e+00> : vector<16x128xf32>
    %7 = tpu.matmul %3, %6, %cst_6 {dimension_numbers = #tpu.dot_dimension_numbers<[1], [0], [0], [1], [0, 0, 1, 1], [], []>} : vector<16x128xf32>, vector<128x128xf32>, vector<16x128xf32> -> vector<16x128xf32>
    %8 = arith.negf %5 : vector<16x128xf32>
    %9 = math.exp %8 : vector<16x128xf32>
    %cst_7 = arith.constant 1.000000e+00 : f32
    %10 = vector.broadcast %cst_7 : f32 to vector<16x128xf32>
    %11 = arith.addf %10, %9 : vector<16x128xf32>
    %12 = arith.divf %10, %11 : vector<16x128xf32>
    %13 = arith.mulf %5, %12 : vector<16x128xf32>
    %14 = arith.mulf %13, %7 : vector<16x128xf32>
    %c0_8 = arith.constant 0 : index
    %c0_9 = arith.constant 0 : index
    %15 = vector.load %arg7[%c0_8, %c0_9] : memref<16x128xf32, #tpu.memory_space<vmem>>, vector<16x128xf32>
    %c0_10 = arith.constant 0 : index
    %c0_11 = arith.constant 0 : index
    %16 = vector.load %arg5[%c0_10, %c0_11] : memref<128x128xf32, #tpu.memory_space<vmem>>, vector<128x128xf32>
    %cst_12 = arith.constant dense<0.000000e+00> : vector<16x128xf32>
    %17 = tpu.matmul %14, %16, %cst_12 {dimension_numbers = #tpu.dot_dimension_numbers<[1], [0], [0], [1], [0, 0, 1, 1], [], []>} : vector<16x128xf32>, vector<128x128xf32>, vector<16x128xf32> -> vector<16x128xf32>
    %18 = arith.addf %15, %17 : vector<16x128xf32>
    %c0_13 = arith.constant 0 : index
    %c0_14 = arith.constant 0 : index
    %19 = vector.load %arg7[%c0_13, %c0_14] : memref<16x128xf32, #tpu.memory_space<vmem>>, vector<16x128xf32>
    tpu.vector_store %arg7[%c0_13, %c0_14], %18 {strides = array<i32>} : memref<16x128xf32, #tpu.memory_space<vmem>>, vector<16x128xf32>,
    %c0_i32_15 = arith.constant 0 : i32
    %20 = arith.cmpi eq, %arg1, %c0_i32_15 : i32
    %21 = arith.extui %20 : i1 to i32
    %c0_i32_16 = arith.constant 0 : i32
    %22 = arith.cmpi ne, %21, %c0_i32_16 : i32
    scf.if %22 {
      %c0_17 = arith.constant 0 : index
      %c0_18 = arith.constant 0 : index
      %23 = vector.load %arg7[%c0_17, %c0_18] : memref<16x128xf32, #tpu.memory_space<vmem>>, vector<16x128xf32>
      %c0_19 = arith.constant 0 : index
      %c0_20 = arith.constant 0 : index
      %24 = vector.load %arg6[%c0_19, %c0_20] : memref<16x128xf32, #tpu.memory_space<vmem>>, vector<16x128xf32>
      tpu.vector_store %arg6[%c0_19, %c0_20], %23 {strides = array<i32>} : memref<16x128xf32, #tpu.memory_space<vmem>>, vector<16x128xf32>,
    } else {
    }
    return
  }
  func.func @transform_0(%arg0: i32, %arg1: i32) -> (i32, i32) {
    %c0_i32 = arith.constant 0 : i32
    %c0_i32_0 = arith.constant 0 : i32
    return %arg0, %c0_i32 : i32, i32
  }
  func.func @transform_1(%arg0: i32, %arg1: i32) -> (i32, i32) {
    %c0_i32 = arith.constant 0 : i32
    %c0_i32_0 = arith.constant 0 : i32
    return %c0_i32, %arg1 : i32, i32
  }
  func.func @transform_2(%arg0: i32, %arg1: i32) -> (i32, i32) {
    %c0_i32 = arith.constant 0 : i32
    %c0_i32_0 = arith.constant 0 : i32
    return %c0_i32, %arg1 : i32, i32
  }
  func.func @transform_3(%arg0: i32, %arg1: i32) -> (i32, i32) {
    %c0_i32 = arith.constant 0 : i32
    %c0_i32_0 = arith.constant 0 : i32
    return %arg1, %c0_i32 : i32, i32
  }
  func.func @transform_4(%arg0: i32, %arg1: i32) -> (i32, i32) {
    %c0_i32 = arith.constant 0 : i32
    %c0_i32_0 = arith.constant 0 : i32
    return %arg0, %c0_i32 : i32, i32
  }
}

</mosaic_0001>

<llo_original>
// kernel: tpu_custom_call.1
$region0: #{tpu_custom_call.1}
  #allocation0 [shape = 'u32[]', space=smem, size = 0x4, offset = 0x4, fixed_abs, tag = 'smem constant byte address 0x4 - core index']
  #allocation1 [shape = 'u32[144,128]{1,0:T(1,128)}', space=vmem, size = 0x12000, scoped, tag = 'internal scratch']
  #allocation2 [shape = 'f32[16,128]{1,0:T(8,128)}', space=vmem, size = 0x2000, scoped, tag = 'scratch operand']
  %s0 = inlined_call_operand.hbm [shape: f32[16,128], index: 0, kind: input, shape index: {}]
  %s1 = inlined_call_operand.hbm [shape: f32[128,128], index: 1, kind: input, shape index: {}]
  %s2 = inlined_call_operand.hbm [shape: f32[128,128], index: 2, kind: input, shape index: {}]
  %s3 = inlined_call_operand.hbm [shape: f32[128,128], index: 3, kind: input, shape index: {}]
  %s4 = inlined_call_operand.hbm [shape: f32[16,128], index: 4, kind: output, shape index: {}]
  %s5 = sld [smem:[#allocation0]]
  $region50: #{tpu_custom_call.1} parent=0
    _
  %s7 = ssub.s32 1, %s5
  %s8 = scalar_select 0, %s7, %s5
  $region1: #{tpu_custom_call.1} parent=0
    #allocation3 [shape = 'u8[8192]{0}', space=vmem, size = 0x2000, scoped, tag = 'input window, operand 0, single buffered']
    #allocation4 [shape = 's32[1]{0}', space=sflag, size = 0x4, scoped, tag = 'scoped memory for tpu_custom_call.1']
    #allocation5 [shape = 's32[1]{0}', space=sflag, size = 0x4, scoped, tag = 'scoped memory for tpu_custom_call.1']
    #allocation6 [shape = 'u8[65536]{0}', space=vmem, size = 0x10000, scoped, tag = 'input window, operand 1, single buffered']
    #allocation7 [shape = 's32[1]{0}', space=sflag, size = 0x4, scoped, tag = 'scoped memory for tpu_custom_call.1']
    #allocation8 [shape = 'u8[65536]{0}', space=vmem, size = 0x10000, scoped, tag = 'input window, operand 2, single buffered']
    #allocation9 [shape = 'u8[65536]{0}', space=vmem, size = 0x10000, scoped, tag = 'input window, operand 3, single buffered']
    #allocation10 [shape = 's32[1]{0}', space=sflag, size = 0x4, scoped, tag = 'scoped memory for tpu_custom_call.1']
    #allocation11 [shape = 'u8[8192]{0}', space=vmem, size = 0x2000, scoped, tag = 'output window, operand 0, single buffered']
    %9 = vsyncpa [#allocation4], 0
    %10 = vsyncpa [#allocation7], 0
    %11 = vsyncpa [#allocation10], 0
    %12 = vsyncpa [#allocation5], 0
    // Predicated region
    $region2: #{tpu_custom_call.1} parent=1 // pred_check
      _
    $region3: #{tpu_custom_call.1} parent=1 // pred_check_branch
      %14 = sbr.rel (0) target = $region5
    $region4: #{tpu_custom_call.1} parent=1 // pred_region
      %s16 = ssub.s32 256, 256
      %17 = vsyncadd [#allocation4], %s16
      %s18 = sshll.u32 [#allocation3], 4
      %s19 = int_to_ptr.vmem [resolvable:$true] %s18
      %24 = dma.hbm_to_vmem [thread:$0]  %s0, 256, %s19, [#allocation4], 128, 128, 8
    $region5: #{tpu_custom_call.1} parent=1 // pred_fallthru
      _
    // Predicated region
    $region6: #{tpu_custom_call.1} parent=1 // pred_check
      _
    $region7: #{tpu_custom_call.1} parent=1 // pred_check_branch
      %26 = sbr.rel (0) target = $region9
    $region8: #{tpu_custom_call.1} parent=1 // pred_region
      %s28 = ssub.s32 2048, 2048
      %29 = vsyncadd [#allocation7], %s28
      %s30 = sshll.u32 [#allocation6], 4
      %s31 = int_to_ptr.vmem [resolvable:$true] %s30
      %36 = dma.hbm_to_vmem [thread:$0]  %s1, 2048, %s31, [#allocation7], 128, 128, 8
    $region9: #{tpu_custom_call.1} parent=1 // pred_fallthru
      _
    // Predicated region
    $region10: #{tpu_custom_call.1} parent=1 // pred_check
      _
    $region11: #{tpu_custom_call.1} parent=1 // pred_check_branch
      %38 = sbr.rel (0) target = $region13
    $region12: #{tpu_custom_call.1} parent=1 // pred_region
      %s40 = ssub.s32 2048, 2048
      %41 = vsyncadd [#allocation7], %s40
      %s42 = sshll.u32 [#allocation8], 4
      %s43 = int_to_ptr.vmem [resolvable:$true] %s42
      %48 = dma.hbm_to_vmem [thread:$0]  %s2, 2048, %s43, [#allocation7], 128, 128, 8
    $region13: #{tpu_custom_call.1} parent=1 // pred_fallthru
      _
    // Predicated region
    $region14: #{tpu_custom_call.1} parent=1 // pred_check
      _
    $region15: #{tpu_custom_call.1} parent=1 // pred_check_branch
      %50 = sbr.rel (0) target = $region17
    $region16: #{tpu_custom_call.1} parent=1 // pred_region
      %s52 = ssub.s32 2048, 2048
      %53 = vsyncadd [#allocation10], %s52
      %s54 = sshll.u32 [#allocation9], 4
      %s55 = int_to_ptr.vmem [resolvable:$true] %s54
      %60 = dma.hbm_to_vmem [thread:$0]  %s3, 2048, %s55, [#allocation10], 128, 128, 8
    $region17: #{tpu_custom_call.1} parent=1 // pred_fallthru
      _
    // Predicated region
    $region18: #{tpu_custom_call.1} parent=1 // pred_check
      _
    $region19: #{tpu_custom_call.1} parent=1 // pred_check_branch
      %62 = sbr.rel (0) target = $region21
    $region20: #{tpu_custom_call.1} parent=1 // pred_region
      %63 = dma.done [#allocation4], 256
    $region21: #{tpu_custom_call.1} parent=1 // pred_fallthru
      _
    // Predicated region
    $region22: #{tpu_custom_call.1} parent=1 // pred_check
      _
    $region23: #{tpu_custom_call.1} parent=1 // pred_check_branch
      %65 = sbr.rel (0) target = $region25
    $region24: #{tpu_custom_call.1} parent=1 // pred_region
      %66 = dma.done [#allocation7], 2048
    $region25: #{tpu_custom_call.1} parent=1 // pred_fallthru
      _
    // Predicated region
    $region26: #{tpu_custom_call.1} parent=1 // pred_check
      _
    $region27: #{tpu_custom_call.1} parent=1 // pred_check_branch
      %68 = sbr.rel (0) target = $region29
    $region28: #{tpu_custom_call.1} parent=1 // pred_region
      %69 = dma.done [#allocation7], 2048
    $region29: #{tpu_custom_call.1} parent=1 // pred_fallthru
      _
    // Predicated region
    $region30: #{tpu_custom_call.1} parent=1 // pred_check
      _
    $region31: #{tpu_custom_call.1} parent=1 // pred_check_branch
      %71 = sbr.rel (0) target = $region33
    $region32: #{tpu_custom_call.1} parent=1 // pred_region
      %72 = dma.done [#allocation10], 2048
    $region33: #{tpu_custom_call.1} parent=1 // pred_fallthru
      _
    %p73 = scmp.eq.s32.totalorder 0, 0
    // Predicated region
    $region34: #{tpu_custom_call.1} parent=1 // pred_check
      %p74 = pneg %p73
    $region35: #{tpu_custom_call.1} parent=1 // pred_check_branch
      %76 = sbr.rel (%p74) target = $region37
    $region36: #{tpu_custom_call.1} parent=1 // pred_region
      %77 = vst [vmem:[#allocation2] sm:$0xff] 0.0
      %78 = vst [vmem:[#allocation2 + $0x8] sm:$0xff] 0.0
    $region37: #{tpu_custom_call.1} parent=1 // pred_fallthru
      _
    %v79 = vld [vmem:[#allocation3] sm:$0xff]
    %v80 = vld [vmem:[#allocation3 + $0x8] sm:$0xff]
    %v81 = vld [vmem:[#allocation6] sm:$0xff]
    %v82 = vld [vmem:[#allocation6 + $0x8] sm:$0xff]
    %v83 = vld [vmem:[#allocation6 + $0x10] sm:$0xff]
    %v84 = vld [vmem:[#allocation6 + $0x18] sm:$0xff]
    %v85 = vld [vmem:[#allocation6 + $0x20] sm:$0xff]
    %v86 = vld [vmem:[#allocation6 + $0x28] sm:$0xff]
    %v87 = vld [vmem:[#allocation6 + $0x30] sm:$0xff]
    %v88 = vld [vmem:[#allocation6 + $0x38] sm:$0xff]
    %v89 = vld [vmem:[#allocation6 + $0x40] sm:$0xff]
    %v90 = vld [vmem:[#allocation6 + $0x48] sm:$0xff]
    %v91 = vld [vmem:[#allocation6 + $0x50] sm:$0xff]
    %v92 = vld [vmem:[#allocation6 + $0x58] sm:$0xff]
    %v93 = vld [vmem:[#allocation6 + $0x60] sm:$0xff]
    %v94 = vld [vmem:[#allocation6 + $0x68] sm:$0xff]
    %v95 = vld [vmem:[#allocation6 + $0x70] sm:$0xff]
    %v96 = vld [vmem:[#allocation6 + $0x78] sm:$0xff]
    %97 = vmatprep.subr.mxu0 0.0
    %98 = vmatpush1.msra.mxu0 %v81
    %99 = vmatprep.subr.mxu0 0.0
    %100 = vmatpush1.msra.mxu0 %v82
    %101 = vmatprep.subr.mxu0 0.0
    %102 = vmatpush1.msra.mxu0 %v83
    %103 = vmatprep.subr.mxu0 0.0
    %104 = vmatpush1.msra.mxu0 %v84
    %105 = vmatprep.subr.mxu0 0.0
    %106 = vmatpush1.msra.mxu0 %v85
    %107 = vmatprep.subr.mxu0 0.0
    %108 = vmatpush1.msra.mxu0 %v86
    %109 = vmatprep.subr.mxu0 0.0
    %110 = vmatpush1.msra.mxu0 %v87
    %111 = vmatprep.subr.mxu0 0.0
    %112 = vmatpush1.msra.mxu0 %v88
    %113 = vmatprep.subr.mxu0 0.0
    %114 = vmatpush1.msra.mxu0 %v89
    %115 = vmatprep.subr.mxu0 0.0
    %116 = vmatpush1.msra.mxu0 %v90
    %117 = vmatprep.subr.mxu0 0.0
    %118 = vmatpush1.msra.mxu0 %v91
    %119 = vmatprep.subr.mxu0 0.0
    %120 = vmatpush1.msra.mxu0 %v92
    %121 = vmatprep.subr.mxu0 0.0
    %122 = vmatpush1.msra.mxu0 %v93
    %123 = vmatprep.subr.mxu0 0.0
    %124 = vmatpush1.msra.mxu0 %v94
    %125 = vmatprep.subr.mxu0 0.0
    %126 = vmatpush1.msra.mxu0 %v95
    %127 = vmatprep.subr.mxu0 0.0
    %128 = vmatpush1.msra.mxu0 %v96
    %129 = vmatprep.subr.mxu0 0.0
    %130 = vmatpush1.msra.mxu0 0.0
    %131 = vmatprep.subr.mxu0 0.0
    %132 = vmatpush1.msra.mxu0 0.0
    %133 = vmatprep.subr.mxu0 0.0
    %134 = vmatpush1.msra.mxu0 0.0
    %135 = vmatprep.subr.mxu0 0.0
    %136 = vmatpush1.msra.mxu0 0.0
    %137 = vmatprep.subr.mxu0 0.0
    %138 = vmatpush1.msra.mxu0 0.0
    %139 = vmatprep.subr.mxu0 0.0
    %140 = vmatpush1.msra.mxu0 0.0
    %141 = vmatprep.subr.mxu0 0.0
    %142 = vmatpush1.msra.mxu0 0.0
    %143 = vmatprep.subr.mxu0 0.0
    %144 = vmatpush1.msra.mxu0 0.0
    %145 = vmatprep.subr.mxu0 0.0
    %146 = vmatpush1.msra.mxu0 0.0
    %147 = vmatprep.subr.mxu0 0.0
    %148 = vmatpush1.msra.mxu0 0.0
    %149 = vmatprep.subr.mxu0 0.0
    %150 = vmatpush1.msra.mxu0 0.0
    %151 = vmatprep.subr.mxu0 0.0
    %152 = vmatpush1.msra.mxu0 0.0
    %153 = vmatprep.subr.mxu0 0.0
    %154 = vmatpush1.msra.mxu0 0.0
    %155 = vmatprep.subr.mxu0 0.0
    %156 = vmatpush1.msra.mxu0 0.0
    %157 = vmatprep.subr.mxu0 0.0
    %158 = vmatpush1.msra.mxu0 0.0
    %159 = vmatprep.subr.mxu0 0.0
    %160 = vmatpush1.msra.mxu0 0.0
    %161 = vmatprep.mubr.f32.mxu0 0.0
    %162 = vmatmul.mubr.f32.gmra.mrb[0].mxu0 %v79
    %v163 = vpop.f32.mrb[0].mxu0
    %v164 = vadd.f32 0.0, %v163
    %v165 = vpop.f32.mrb[0].mxu0
    %166 = vmatprep.mubr.f32.mxu0 0.0
    %167 = vmatmul.mubr.f32.gmra.mrb[0].mxu0 %v80
    %v168 = vpop.f32.mrb[0].mxu0
    %v169 = vadd.f32 0.0, %v168
    %v170 = vpop.f32.mrb[0].mxu0
    %171 = vdwg.mxu0
    %v172 = vld [vmem:[#allocation8] sm:$0xff]
    %v173 = vld [vmem:[#allocation8 + $0x8] sm:$0xff]
    %v174 = vld [vmem:[#allocation8 + $0x10] sm:$0xff]
    %v175 = vld [vmem:[#allocation8 + $0x18] sm:$0xff]
    %v176 = vld [vmem:[#allocation8 + $0x20] sm:$0xff]
    %v177 = vld [vmem:[#allocation8 + $0x28] sm:$0xff]
    %v178 = vld [vmem:[#allocation8 + $0x30] sm:$0xff]
    %v179 = vld [vmem:[#allocation8 + $0x38] sm:$0xff]
    %v180 = vld [vmem:[#allocation8 + $0x40] sm:$0xff]
    %v181 = vld [vmem:[#allocation8 + $0x48] sm:$0xff]
    %v182 = vld [vmem:[#allocation8 + $0x50] sm:$0xff]
    %v183 = vld [vmem:[#allocation8 + $0x58] sm:$0xff]
    %v184 = vld [vmem:[#allocation8 + $0x60] sm:$0xff]
    %v185 = vld [vmem:[#allocation8 + $0x68] sm:$0xff]
    %v186 = vld [vmem:[#allocation8 + $0x70] sm:$0xff]
    %v187 = vld [vmem:[#allocation8 + $0x78] sm:$0xff]
    %188 = vmatprep.subr.mxu0 0.0
    %189 = vmatpush1.msra.mxu0 %v172
    %190 = vmatprep.subr.mxu0 0.0
    %191 = vmatpush1.msra.mxu0 %v173
    %192 = vmatprep.subr.mxu0 0.0
    %193 = vmatpush1.msra.mxu0 %v174
    %194 = vmatprep.subr.mxu0 0.0
    %195 = vmatpush1.msra.mxu0 %v175
    %196 = vmatprep.subr.mxu0 0.0
    %197 = vmatpush1.msra.mxu0 %v176
    %198 = vmatprep.subr.mxu0 0.0
    %199 = vmatpush1.msra.mxu0 %v177
    %200 = vmatprep.subr.mxu0 0.0
    %201 = vmatpush1.msra.mxu0 %v178
    %202 = vmatprep.subr.mxu0 0.0
    %203 = vmatpush1.msra.mxu0 %v179
    %204 = vmatprep.subr.mxu0 0.0
    %205 = vmatpush1.msra.mxu0 %v180
    %206 = vmatprep.subr.mxu0 0.0
    %207 = vmatpush1.msra.mxu0 %v181
    %208 = vmatprep.subr.mxu0 0.0
    %209 = vmatpush1.msra.mxu0 %v182
    %210 = vmatprep.subr.mxu0 0.0
    %211 = vmatpush1.msra.mxu0 %v183
    %212 = vmatprep.subr.mxu0 0.0
    %213 = vmatpush1.msra.mxu0 %v184
    %214 = vmatprep.subr.mxu0 0.0
    %215 = vmatpush1.msra.mxu0 %v185
    %216 = vmatprep.subr.mxu0 0.0
    %217 = vmatpush1.msra.mxu0 %v186
    %218 = vmatprep.subr.mxu0 0.0
    %219 = vmatpush1.msra.mxu0 %v187
    %220 = vmatprep.subr.mxu0 0.0
    %221 = vmatpush1.msra.mxu0 0.0
    %222 = vmatprep.subr.mxu0 0.0
    %223 = vmatpush1.msra.mxu0 0.0
    %224 = vmatprep.subr.mxu0 0.0
    %225 = vmatpush1.msra.mxu0 0.0
    %226 = vmatprep.subr.mxu0 0.0
    %227 = vmatpush1.msra.mxu0 0.0
    %228 = vmatprep.subr.mxu0 0.0
    %229 = vmatpush1.msra.mxu0 0.0
    %230 = vmatprep.subr.mxu0 0.0
    %231 = vmatpush1.msra.mxu0 0.0
    %232 = vmatprep.subr.mxu0 0.0
    %233 = vmatpush1.msra.mxu0 0.0
    %234 = vmatprep.subr.mxu0 0.0
    %235 = vmatpush1.msra.mxu0 0.0
    %236 = vmatprep.subr.mxu0 0.0
    %237 = vmatpush1.msra.mxu0 0.0
    %238 = vmatprep.subr.mxu0 0.0
    %239 = vmatpush1.msra.mxu0 0.0
    %240 = vmatprep.subr.mxu0 0.0
    %241 = vmatpush1.msra.mxu0 0.0
    %242 = vmatprep.subr.mxu0 0.0
    %243 = vmatpush1.msra.mxu0 0.0
    %244 = vmatprep.subr.mxu0 0.0
    %245 = vmatpush1.msra.mxu0 0.0
    %246 = vmatprep.subr.mxu0 0.0
    %247 = vmatpush1.msra.mxu0 0.0
    %248 = vmatprep.subr.mxu0 0.0
    %249 = vmatpush1.msra.mxu0 0.0
    %250 = vmatprep.subr.mxu0 0.0
    %251 = vmatpush1.msra.mxu0 0.0
    %252 = vmatprep.mubr.f32.mxu0 0.0
    %253 = vmatmul.mubr.f32.gmra.mrb[0].mxu0 %v79
    %v254 = vpop.f32.mrb[0].mxu0
    %v255 = vadd.f32 0.0, %v254
    %v256 = vpop.f32.mrb[0].mxu0
    %257 = vmatprep.mubr.f32.mxu0 0.0
    %258 = vmatmul.mubr.f32.gmra.mrb[0].mxu0 %v80
    %v259 = vpop.f32.mrb[0].mxu0
    %v260 = vadd.f32 0.0, %v259
    %v261 = vpop.f32.mrb[0].mxu0
    %262 = vdwg.mxu0
    %v263 = vxor.u32 %v164, 2147483648
    %v264 = vxor.u32 %v169, 2147483648
    %v265 = vmul.f32 %v263, 1.442695
    %v266 = vpow.pop %v265
    %v267 = vmul.f32 %v264, 1.442695
    %v268 = vpow.pop %v267
    %v269 = vadd.f32 %v266, 1.0
    %v270 = vadd.f32 %v268, 1.0
    %v271 = vrcp.pop %v269
    %v272 = vmul.f32 1.0, %v271
    %v273 = vrcp.pop %v270
    %v274 = vmul.f32 1.0, %v273
    %v275 = vmul.f32 %v164, %v272
    %v276 = vmul.f32 %v169, %v274
    %v277 = vmul.f32 %v275, %v255
    %v278 = vmul.f32 %v276, %v260
    %v279 = vld [vmem:[#allocation2] sm:$0xff]
    %v280 = vld [vmem:[#allocation2 + $0x8] sm:$0xff]
    %v281 = vld [vmem:[#allocation9] sm:$0xff]
    %v282 = vld [vmem:[#allocation9 + $0x8] sm:$0xff]
    %v283 = vld [vmem:[#allocation9 + $0x10] sm:$0xff]
    %v284 = vld [vmem:[#allocation9 + $0x18] sm:$0xff]
    %v285 = vld [vmem:[#allocation9 + $0x20] sm:$0xff]
    %v286 = vld [vmem:[#allocation9 + $0x28] sm:$0xff]
    %v287 = vld [vmem:[#allocation9 + $0x30] sm:$0xff]
    %v288 = vld [vmem:[#allocation9 + $0x38] sm:$0xff]
    %v289 = vld [vmem:[#allocation9 + $0x40] sm:$0xff]
    %v290 = vld [vmem:[#allocation9 + $0x48] sm:$0xff]
    %v291 = vld [vmem:[#allocation9 + $0x50] sm:$0xff]
    %v292 = vld [vmem:[#allocation9 + $0x58] sm:$0xff]
    %v293 = vld [vmem:[#allocation9 + $0x60] sm:$0xff]
    %v294 = vld [vmem:[#allocation9 + $0x68] sm:$0xff]
    %v295 = vld [vmem:[#allocation9 + $0x70] sm:$0xff]
    %v296 = vld [vmem:[#allocation9 + $0x78] sm:$0xff]
    %297 = vmatprep.subr.mxu0 0.0
    %298 = vmatpush1.msra.mxu0 %v281
    %299 = vmatprep.subr.mxu0 0.0
    %300 = vmatpush1.msra.mxu0 %v282
    %301 = vmatprep.subr.mxu0 0.0
    %302 = vmatpush1.msra.mxu0 %v283
    %303 = vmatprep.subr.mxu0 0.0
    %304 = vmatpush1.msra.mxu0 %v284
    %305 = vmatprep.subr.mxu0 0.0
    %306 = vmatpush1.msra.mxu0 %v285
    %307 = vmatprep.subr.mxu0 0.0
    %308 = vmatpush1.msra.mxu0 %v286
    %309 = vmatprep.subr.mxu0 0.0
    %310 = vmatpush1.msra.mxu0 %v287
    %311 = vmatprep.subr.mxu0 0.0
    %312 = vmatpush1.msra.mxu0 %v288
    %313 = vmatprep.subr.mxu0 0.0
    %314 = vmatpush1.msra.mxu0 %v289
    %315 = vmatprep.subr.mxu0 0.0
    %316 = vmatpush1.msra.mxu0 %v290
    %317 = vmatprep.subr.mxu0 0.0
    %318 = vmatpush1.msra.mxu0 %v291
    %319 = vmatprep.subr.mxu0 0.0
    %320 = vmatpush1.msra.mxu0 %v292
    %321 = vmatprep.subr.mxu0 0.0
    %322 = vmatpush1.msra.mxu0 %v293
    %323 = vmatprep.subr.mxu0 0.0
    %324 = vmatpush1.msra.mxu0 %v294
    %325 = vmatprep.subr.mxu0 0.0
    %326 = vmatpush1.msra.mxu0 %v295
    %327 = vmatprep.subr.mxu0 0.0
    %328 = vmatpush1.msra.mxu0 %v296
    %329 = vmatprep.subr.mxu0 0.0
    %330 = vmatpush1.msra.mxu0 0.0
    %331 = vmatprep.subr.mxu0 0.0
    %332 = vmatpush1.msra.mxu0 0.0
    %333 = vmatprep.subr.mxu0 0.0
    %334 = vmatpush1.msra.mxu0 0.0
    %335 = vmatprep.subr.mxu0 0.0
    %336 = vmatpush1.msra.mxu0 0.0
    %337 = vmatprep.subr.mxu0 0.0
    %338 = vmatpush1.msra.mxu0 0.0
    %339 = vmatprep.subr.mxu0 0.0
    %340 = vmatpush1.msra.mxu0 0.0
    %341 = vmatprep.subr.mxu0 0.0
    %342 = vmatpush1.msra.mxu0 0.0
    %343 = vmatprep.subr.mxu0 0.0
    %344 = vmatpush1.msra.mxu0 0.0
    %345 = vmatprep.subr.mxu0 0.0
    %346 = vmatpush1.msra.mxu0 0.0
    %347 = vmatprep.subr.mxu0 0.0
    %348 = vmatpush1.msra.mxu0 0.0
    %349 = vmatprep.subr.mxu0 0.0
    %350 = vmatpush1.msra.mxu0 0.0
    %351 = vmatprep.subr.mxu0 0.0
    %352 = vmatpush1.msra.mxu0 0.0
    %353 = vmatprep.subr.mxu0 0.0
    %354 = vmatpush1.msra.mxu0 0.0
    %355 = vmatprep.subr.mxu0 0.0
    %356 = vmatpush1.msra.mxu0 0.0
    %357 = vmatprep.subr.mxu0 0.0
    %358 = vmatpush1.msra.mxu0 0.0
    %359 = vmatprep.subr.mxu0 0.0
    %360 = vmatpush1.msra.mxu0 0.0
    %361 = vmatprep.mubr.f32.mxu0 0.0
    %362 = vmatmul.mubr.f32.gmra.mrb[0].mxu0 %v277
    %v363 = vpop.f32.mrb[0].mxu0
    %v364 = vadd.f32 0.0, %v363
    %v365 = vpop.f32.mrb[0].mxu0
    %366 = vmatprep.mubr.f32.mxu0 0.0
    %367 = vmatmul.mubr.f32.gmra.mrb[0].mxu0 %v278
    %v368 = vpop.f32.mrb[0].mxu0
    %v369 = vadd.f32 0.0, %v368
    %v370 = vpop.f32.mrb[0].mxu0
    %371 = vdwg.mxu0
    %v372 = vadd.f32 %v279, %v364
    %v373 = vadd.f32 %v280, %v369
    %374 = vst [vmem:[#allocation2] sm:$0xff] %v372
    %375 = vst [vmem:[#allocation2 + $0x8] sm:$0xff] %v373
    // Predicated region
    $region38: #{tpu_custom_call.1} parent=1 // pred_check
      %p376 = pneg %p73
    $region39: #{tpu_custom_call.1} parent=1 // pred_check_branch
      %378 = sbr.rel (%p376) target = $region41
    $region40: #{tpu_custom_call.1} parent=1 // pred_region
      %v379 = vld [vmem:[#allocation2] sm:$0xff]
      %v380 = vld [vmem:[#allocation2 + $0x8] sm:$0xff]
      %381 = vst [vmem:[#allocation11] sm:$0xff] %v379
      %382 = vst [vmem:[#allocation11 + $0x8] sm:$0xff] %v380
    $region41: #{tpu_custom_call.1} parent=1 // pred_fallthru
      _
    // Predicated region
    $region42: #{tpu_custom_call.1} parent=1 // pred_check
      _
    $region43: #{tpu_custom_call.1} parent=1 // pred_check_branch
      %384 = sbr.rel (0) target = $region45
    $region44: #{tpu_custom_call.1} parent=1 // pred_region
      %s386 = ssub.s32 256, 256
      %387 = vsyncadd [#allocation5], %s386
      %s388 = sshll.u32 [#allocation11], 4
      %s389 = int_to_ptr.vmem [resolvable:$true] %s388
      %394 = dma.vmem_to_hbm [thread:$0]  %s389, 256, %s4, [#allocation5], 128, 128, 8
    $region45: #{tpu_custom_call.1} parent=1 // pred_fallthru
      _
    // Predicated region
    $region46: #{tpu_custom_call.1} parent=1 // pred_check
      _
    $region47: #{tpu_custom_call.1} parent=1 // pred_check_branch
      %396 = sbr.rel (0) target = $region49
    $region48: #{tpu_custom_call.1} parent=1 // pred_region
      %397 = dma.done [#allocation5], 256
    $region49: #{tpu_custom_call.1} parent=1 // pred_fallthru
      _
    %398 = vsyncpa [#allocation4], 1
    %399 = vsyncpa [#allocation7], 1
    %400 = vsyncpa [#allocation10], 1
    %401 = vsyncpa [#allocation5], 1

// kernel: tpu_custom_call.1
$region0: #{tpu_custom_call.1}
  #allocation0 [shape = 'u32[]', space=smem, size = 0x4, offset = 0x4, fixed_abs, tag = 'smem constant byte address 0x4 - core index']
  #allocation1 [shape = 'u32[144,128]{1,0:T(1,128)}', space=vmem, size = 0x12000, scoped, tag = 'internal scratch']
  #allocation2 [shape = 'f32[16,128]{1,0:T(8,128)}', space=vmem, size = 0x2000, scoped, tag = 'scratch operand']
  %s0 = inlined_call_operand.hbm [shape: f32[16,128], index: 0, kind: input, shape index: {}]
  %s1 = inlined_call_operand.hbm [shape: f32[128,128], index: 1, kind: input, shape index: {}]
  %s2 = inlined_call_operand.hbm [shape: f32[128,128], index: 2, kind: input, shape index: {}]
  %s3 = inlined_call_operand.hbm [shape: f32[128,128], index: 3, kind: input, shape index: {}]
  %s4 = inlined_call_operand.hbm [shape: f32[16,128], index: 4, kind: output, shape index: {}]
  %s5 = sld [smem:[#allocation0]]
  $region50: #{tpu_custom_call.1} parent=0
    _
  %s7 = ssub.s32 1, %s5
  %s8 = scalar_select 0, %s7, %s5
  $region1: #{tpu_custom_call.1} parent=0
    #allocation3 [shape = 'u8[8192]{0}', space=vmem, size = 0x2000, scoped, tag = 'input window, operand 0, single buffered']
    #allocation4 [shape = 's32[1]{0}', space=sflag, size = 0x4, scoped, tag = 'scoped memory for tpu_custom_call.1']
    #allocation5 [shape = 's32[1]{0}', space=sflag, size = 0x4, scoped, tag = 'scoped memory for tpu_custom_call.1']
    #allocation6 [shape = 'u8[65536]{0}', space=vmem, size = 0x10000, scoped, tag = 'input window, operand 1, single buffered']
    #allocation7 [shape = 's32[1]{0}', space=sflag, size = 0x4, scoped, tag = 'scoped memory for tpu_custom_call.1']
    #allocation8 [shape = 'u8[65536]{0}', space=vmem, size = 0x10000, scoped, tag = 'input window, operand 2, single buffered']
    #allocation9 [shape = 'u8[65536]{0}', space=vmem, size = 0x10000, scoped, tag = 'input window, operand 3, single buffered']
    #allocation10 [shape = 's32[1]{0}', space=sflag, size = 0x4, scoped, tag = 'scoped memory for tpu_custom_call.1']
    #allocation11 [shape = 'u8[8192]{0}', space=vmem, size = 0x2000, scoped, tag = 'output window, operand 0, single buffered']
    %9 = vsyncpa [#allocation4], 0
    %10 = vsyncpa [#allocation7], 0
    %11 = vsyncpa [#allocation10], 0
    %12 = vsyncpa [#allocation5], 0
    // Predicated region
    $region2: #{tpu_custom_call.1} parent=1 // pred_check
      _
    $region3: #{tpu_custom_call.1} parent=1 // pred_check_branch
      %14 = sbr.rel (0) target = $region5
    $region4: #{tpu_custom_call.1} parent=1 // pred_region
      %s16 = ssub.s32 256, 256
      %17 = vsyncadd [#allocation4], %s16
      %s18 = sshll.u32 [#allocation3], 4
      %s19 = int_to_ptr.vmem [resolvable:$true] %s18
      %24 = dma.hbm_to_vmem [thread:$0]  %s0, 256, %s19, [#allocation4], 128, 128, 8
    $region5: #{tpu_custom_call.1} parent=1 // pred_fallthru
      _
    // Predicated region
    $region6: #{tpu_custom_call.1} parent=1 // pred_check
      _
    $region7: #{tpu_custom_call.1} parent=1 // pred_check_branch
      %26 = sbr.rel (0) target = $region9
    $region8: #{tpu_custom_call.1} parent=1 // pred_region
      %s28 = ssub.s32 2048, 2048
      %29 = vsyncadd [#allocation7], %s28
      %s30 = sshll.u32 [#allocation6], 4
      %s31 = int_to_ptr.vmem [resolvable:$true] %s30
      %36 = dma.hbm_to_vmem [thread:$0]  %s1, 2048, %s31, [#allocation7], 128, 128, 8
    $region9: #{tpu_custom_call.1} parent=1 // pred_fallthru
      _
    // Predicated region
    $region10: #{tpu_custom_call.1} parent=1 // pred_check
      _
    $region11: #{tpu_custom_call.1} parent=1 // pred_check_branch
      %38 = sbr.rel (0) target = $region13
    $region12: #{tpu_custom_call.1} parent=1 // pred_region
      %s40 = ssub.s32 2048, 2048
      %41 = vsyncadd [#allocation7], %s40
      %s42 = sshll.u32 [#allocation8], 4
      %s43 = int_to_ptr.vmem [resolvable:$true] %s42
      %48 = dma.hbm_to_vmem [thread:$0]  %s2, 2048, %s43, [#allocation7], 128, 128, 8
    $region13: #{tpu_custom_call.1} parent=1 // pred_fallthru
      _
    // Predicated region
    $region14: #{tpu_custom_call.1} parent=1 // pred_check
      _
    $region15: #{tpu_custom_call.1} parent=1 // pred_check_branch
      %50 = sbr.rel (0) target = $region17
    $region16: #{tpu_custom_call.1} parent=1 // pred_region
      %s52 = ssub.s32 2048, 2048
      %53 = vsyncadd [#allocation10], %s52
      %s54 = sshll.u32 [#allocation9], 4
      %s55 = int_to_ptr.vmem [resolvable:$true] %s54
      %60 = dma.hbm_to_vmem [thread:$0]  %s3, 2048, %s55, [#allocation10], 128, 128, 8
    $region17: #{tpu_custom_call.1} parent=1 // pred_fallthru
      _
    // Predicated region
    $region18: #{tpu_custom_call.1} parent=1 // pred_check
      _
    $region19: #{tpu_custom_call.1} parent=1 // pred_check_branch
      %62 = sbr.rel (0) target = $region21
    $region20: #{tpu_custom_call.1} parent=1 // pred_region
      %63 = dma.done [#allocation4], 256
    $region21: #{tpu_custom_call.1} parent=1 // pred_fallthru
      _
    // Predicated region
    $region22: #{tpu_custom_call.1} parent=1 // pred_check
      _
    $region23: #{tpu_custom_call.1} parent=1 // pred_check_branch
      %65 = sbr.rel (0) target = $region25
    $region24: #{tpu_custom_call.1} parent=1 // pred_region
      %66 = dma.done [#allocation7], 2048
    $region25: #{tpu_custom_call.1} parent=1 // pred_fallthru
      _
    // Predicated region
    $region26: #{tpu_custom_call.1} parent=1 // pred_check
      _
    $region27: #{tpu_custom_call.1} parent=1 // pred_check_branch
      %68 = sbr.rel (0) target = $region29
    $region28: #{tpu_custom_call.1} parent=1 // pred_region
      %69 = dma.done [#allocation7], 2048
    $region29: #{tpu_custom_call.1} parent=1 // pred_fallthru
      _
    // Predicated region
    $region30: #{tpu_custom_call.1} parent=1 // pred_check
      _
    $region31: #{tpu_custom_call.1} parent=1 // pred_check_branch
      %71 = sbr.rel (0) target = $region33
    $region32: #{tpu_custom_call.1} parent=1 // pred_region
      %72 = dma.done [#allocation10], 2048
    $region33: #{tpu_custom_call.1} parent=1 // pred_fallthru
      _
    %p73 = scmp.eq.s32.totalorder 0, 0
    // Predicated region
    $region34: #{tpu_custom_call.1} parent=1 // pred_check
      %p74 = pneg %p73
    $region35: #{tpu_custom_call.1} parent=1 // pred_check_branch
      %76 = sbr.rel (%p74) target = $region37
    $region36: #{tpu_custom_call.1} parent=1 // pred_region
      %77 = vst [vmem:[#allocation2] sm:$0xff] 0.0
      %78 = vst [vmem:[#allocation2 + $0x8] sm:$0xff] 0.0
    $region37: #{tpu_custom_call.1} parent=1 // pred_fallthru
      _
    %v79 = vld [vmem:[#allocation3] sm:$0xff]
    %v80 = vld [vmem:[#allocation3 + $0x8] sm:$0xff]
    %v81 = vld [vmem:[#allocation6] sm:$0xff]
    %v82 = vld [vmem:[#allocation6 + $0x8] sm:$0xff]
    %v83 = vld [vmem:[#allocation6 + $0x10] sm:$0xff]
    %v84 = vld [vmem:[#allocation6 + $0x18] sm:$0xff]
    %v85 = vld [vmem:[#allocation6 + $0x20] sm:$0xff]
    %v86 = vld [vmem:[#allocation6 + $0x28] sm:$0xff]
    %v87 = vld [vmem:[#allocation6 + $0x30] sm:$0xff]
    %v88 = vld [vmem:[#allocation6 + $0x38] sm:$0xff]
    %v89 = vld [vmem:[#allocation6 + $0x40] sm:$0xff]
    %v90 = vld [vmem:[#allocation6 + $0x48] sm:$0xff]
    %v91 = vld [vmem:[#allocation6 + $0x50] sm:$0xff]
    %v92 = vld [vmem:[#allocation6 + $0x58] sm:$0xff]
    %v93 = vld [vmem:[#allocation6 + $0x60] sm:$0xff]
    %v94 = vld [vmem:[#allocation6 + $0x68] sm:$0xff]
    %v95 = vld [vmem:[#allocation6 + $0x70] sm:$0xff]
    %v96 = vld [vmem:[#allocation6 + $0x78] sm:$0xff]
    %97 = vmatprep.subr.mxu0 0.0
    %98 = vmatpush1.msra.mxu0 %v81
    %99 = vmatprep.subr.mxu0 0.0
    %100 = vmatpush1.msra.mxu0 %v82
    %101 = vmatprep.subr.mxu0 0.0
    %102 = vmatpush1.msra.mxu0 %v83
    %103 = vmatprep.subr.mxu0 0.0
    %104 = vmatpush1.msra.mxu0 %v84
    %105 = vmatprep.subr.mxu0 0.0
    %106 = vmatpush1.msra.mxu0 %v85
    %107 = vmatprep.subr.mxu0 0.0
    %108 = vmatpush1.msra.mxu0 %v86
    %109 = vmatprep.subr.mxu0 0.0
    %110 = vmatpush1.msra.mxu0 %v87
    %111 = vmatprep.subr.mxu0 0.0
    %112 = vmatpush1.msra.mxu0 %v88
    %113 = vmatprep.subr.mxu0 0.0
    %114 = vmatpush1.msra.mxu0 %v89
    %115 = vmatprep.subr.mxu0 0.0
    %116 = vmatpush1.msra.mxu0 %v90
    %117 = vmatprep.subr.mxu0 0.0
    %118 = vmatpush1.msra.mxu0 %v91
    %119 = vmatprep.subr.mxu0 0.0
    %120 = vmatpush1.msra.mxu0 %v92
    %121 = vmatprep.subr.mxu0 0.0
    %122 = vmatpush1.msra.mxu0 %v93
    %123 = vmatprep.subr.mxu0 0.0
    %124 = vmatpush1.msra.mxu0 %v94
    %125 = vmatprep.subr.mxu0 0.0
    %126 = vmatpush1.msra.mxu0 %v95
    %127 = vmatprep.subr.mxu0 0.0
    %128 = vmatpush1.msra.mxu0 %v96
    %129 = vmatprep.subr.mxu0 0.0
    %130 = vmatpush1.msra.mxu0 0.0
    %131 = vmatprep.subr.mxu0 0.0
    %132 = vmatpush1.msra.mxu0 0.0
    %133 = vmatprep.subr.mxu0 0.0
    %134 = vmatpush1.msra.mxu0 0.0
    %135 = vmatprep.subr.mxu0 0.0
    %136 = vmatpush1.msra.mxu0 0.0
    %137 = vmatprep.subr.mxu0 0.0
    %138 = vmatpush1.msra.mxu0 0.0
    %139 = vmatprep.subr.mxu0 0.0
    %140 = vmatpush1.msra.mxu0 0.0
    %141 = vmatprep.subr.mxu0 0.0
    %142 = vmatpush1.msra.mxu0 0.0
    %143 = vmatprep.subr.mxu0 0.0
    %144 = vmatpush1.msra.mxu0 0.0
    %145 = vmatprep.subr.mxu0 0.0
    %146 = vmatpush1.msra.mxu0 0.0
    %147 = vmatprep.subr.mxu0 0.0
    %148 = vmatpush1.msra.mxu0 0.0
    %149 = vmatprep.subr.mxu0 0.0
    %150 = vmatpush1.msra.mxu0 0.0
    %151 = vmatprep.subr.mxu0 0.0
    %152 = vmatpush1.msra.mxu0 0.0
    %153 = vmatprep.subr.mxu0 0.0
    %154 = vmatpush1.msra.mxu0 0.0
    %155 = vmatprep.subr.mxu0 0.0
    %156 = vmatpush1.msra.mxu0 0.0
    %157 = vmatprep.subr.mxu0 0.0
    %158 = vmatpush1.msra.mxu0 0.0
    %159 = vmatprep.subr.mxu0 0.0
    %160 = vmatpush1.msra.mxu0 0.0
    %161 = vmatprep.mubr.f32.mxu0 0.0
    %162 = vmatmul.mubr.f32.gmra.mrb[0].mxu0 %v79
    %v163 = vpop.f32.mrb[0].mxu0
    %v164 = vadd.f32 0.0, %v163
    %v165 = vpop.f32.mrb[0].mxu0
    %166 = vmatprep.mubr.f32.mxu0 0.0
    %167 = vmatmul.mubr.f32.gmra.mrb[0].mxu0 %v80
    %v168 = vpop.f32.mrb[0].mxu0
    %v169 = vadd.f32 0.0, %v168
    %v170 = vpop.f32.mrb[0].mxu0
    %171 = vdwg.mxu0
    %v172 = vld [vmem:[#allocation8] sm:$0xff]
    %v173 = vld [vmem:[#allocation8 + $0x8] sm:$0xff]
    %v174 = vld [vmem:[#allocation8 + $0x10] sm:$0xff]
    %v175 = vld [vmem:[#allocation8 + $0x18] sm:$0xff]
    %v176 = vld [vmem:[#allocation8 + $0x20] sm:$0xff]
    %v177 = vld [vmem:[#allocation8 + $0x28] sm:$0xff]
    %v178 = vld [vmem:[#allocation8 + $0x30] sm:$0xff]
    %v179 = vld [vmem:[#allocation8 + $0x38] sm:$0xff]
    %v180 = vld [vmem:[#allocation8 + $0x40] sm:$0xff]
    %v181 = vld [vmem:[#allocation8 + $0x48] sm:$0xff]
    %v182 = vld [vmem:[#allocation8 + $0x50] sm:$0xff]
    %v183 = vld [vmem:[#allocation8 + $0x58] sm:$0xff]
    %v184 = vld [vmem:[#allocation8 + $0x60] sm:$0xff]
    %v185 = vld [vmem:[#allocation8 + $0x68] sm:$0xff]
    %v186 = vld [vmem:[#allocation8 + $0x70] sm:$0xff]
    %v187 = vld [vmem:[#allocation8 + $0x78] sm:$0xff]
    %188 = vmatprep.subr.mxu0 0.0
    %189 = vmatpush1.msra.mxu0 %v172
    %190 = vmatprep.subr.mxu0 0.0
    %191 = vmatpush1.msra.mxu0 %v173
    %192 = vmatprep.subr.mxu0 0.0
    %193 = vmatpush1.msra.mxu0 %v174
    %194 = vmatprep.subr.mxu0 0.0
    %195 = vmatpush1.msra.mxu0 %v175
    %196 = vmatprep.subr.mxu0 0.0
    %197 = vmatpush1.msra.mxu0 %v176
    %198 = vmatprep.subr.mxu0 0.0
    %199 = vmatpush1.msra.mxu0 %v177
    %200 = vmatprep.subr.mxu0 0.0
    %201 = vmatpush1.msra.mxu0 %v178
    %202 = vmatprep.subr.mxu0 0.0
    %203 = vmatpush1.msra.mxu0 %v179
    %204 = vmatprep.subr.mxu0 0.0
    %205 = vmatpush1.msra.mxu0 %v180
    %206 = vmatprep.subr.mxu0 0.0
    %207 = vmatpush1.msra.mxu0 %v181
    %208 = vmatprep.subr.mxu0 0.0
    %209 = vmatpush1.msra.mxu0 %v182
    %210 = vmatprep.subr.mxu0 0.0
    %211 = vmatpush1.msra.mxu0 %v183
    %212 = vmatprep.subr.mxu0 0.0
    %213 = vmatpush1.msra.mxu0 %v184
    %214 = vmatprep.subr.mxu0 0.0
    %215 = vmatpush1.msra.mxu0 %v185
    %216 = vmatprep.subr.mxu0 0.0
    %217 = vmatpush1.msra.mxu0 %v186
    %218 = vmatprep.subr.mxu0 0.0
    %219 = vmatpush1.msra.mxu0 %v187
    %220 = vmatprep.subr.mxu0 0.0
    %221 = vmatpush1.msra.mxu0 0.0
    %222 = vmatprep.subr.mxu0 0.0
    %223 = vmatpush1.msra.mxu0 0.0
    %224 = vmatprep.subr.mxu0 0.0
    %225 = vmatpush1.msra.mxu0 0.0
    %226 = vmatprep.subr.mxu0 0.0
    %227 = vmatpush1.msra.mxu0 0.0
    %228 = vmatprep.subr.mxu0 0.0
    %229 = vmatpush1.msra.mxu0 0.0
    %230 = vmatprep.subr.mxu0 0.0
    %231 = vmatpush1.msra.mxu0 0.0
    %232 = vmatprep.subr.mxu0 0.0
    %233 = vmatpush1.msra.mxu0 0.0
    %234 = vmatprep.subr.mxu0 0.0
    %235 = vmatpush1.msra.mxu0 0.0
    %236 = vmatprep.subr.mxu0 0.0
    %237 = vmatpush1.msra.mxu0 0.0
    %238 = vmatprep.subr.mxu0 0.0
    %239 = vmatpush1.msra.mxu0 0.0
    %240 = vmatprep.subr.mxu0 0.0
    %241 = vmatpush1.msra.mxu0 0.0
    %242 = vmatprep.subr.mxu0 0.0
    %243 = vmatpush1.msra.mxu0 0.0
    %244 = vmatprep.subr.mxu0 0.0
    %245 = vmatpush1.msra.mxu0 0.0
    %246 = vmatprep.subr.mxu0 0.0
    %247 = vmatpush1.msra.mxu0 0.0
    %248 = vmatprep.subr.mxu0 0.0
    %249 = vmatpush1.msra.mxu0 0.0
    %250 = vmatprep.subr.mxu0 0.0
    %251 = vmatpush1.msra.mxu0 0.0
    %252 = vmatprep.mubr.f32.mxu0 0.0
    %253 = vmatmul.mubr.f32.gmra.mrb[0].mxu0 %v79
    %v254 = vpop.f32.mrb[0].mxu0
    %v255 = vadd.f32 0.0, %v254
    %v256 = vpop.f32.mrb[0].mxu0
    %257 = vmatprep.mubr.f32.mxu0 0.0
    %258 = vmatmul.mubr.f32.gmra.mrb[0].mxu0 %v80
    %v259 = vpop.f32.mrb[0].mxu0
    %v260 = vadd.f32 0.0, %v259
    %v261 = vpop.f32.mrb[0].mxu0
    %262 = vdwg.mxu0
    %v263 = vxor.u32 %v164, 2147483648
    %v264 = vxor.u32 %v169, 2147483648
    %v265 = vmul.f32 %v263, 1.442695
    %v266 = vpow.pop %v265
    %v267 = vmul.f32 %v264, 1.442695
    %v268 = vpow.pop %v267
    %v269 = vadd.f32 %v266, 1.0
    %v270 = vadd.f32 %v268, 1.0
    %v271 = vrcp.pop %v269
    %v272 = vmul.f32 1.0, %v271
    %v273 = vrcp.pop %v270
    %v274 = vmul.f32 1.0, %v273
    %v275 = vmul.f32 %v164, %v272
    %v276 = vmul.f32 %v169, %v274
    %v277 = vmul.f32 %v275, %v255
    %v278 = vmul.f32 %v276, %v260
    %v279 = vld [vmem:[#allocation2] sm:$0xff]
    %v280 = vld [vmem:[#allocation2 + $0x8] sm:$0xff]
    %v281 = vld [vmem:[#allocation9] sm:$0xff]
    %v282 = vld [vmem:[#allocation9 + $0x8] sm:$0xff]
    %v283 = vld [vmem:[#allocation9 + $0x10] sm:$0xff]
    %v284 = vld [vmem:[#allocation9 + $0x18] sm:$0xff]
    %v285 = vld [vmem:[#allocation9 + $0x20] sm:$0xff]
    %v286 = vld [vmem:[#allocation9 + $0x28] sm:$0xff]
    %v287 = vld [vmem:[#allocation9 + $0x30] sm:$0xff]
    %v288 = vld [vmem:[#allocation9 + $0x38] sm:$0xff]
    %v289 = vld [vmem:[#allocation9 + $0x40] sm:$0xff]
    %v290 = vld [vmem:[#allocation9 + $0x48] sm:$0xff]
    %v291 = vld [vmem:[#allocation9 + $0x50] sm:$0xff]
    %v292 = vld [vmem:[#allocation9 + $0x58] sm:$0xff]
    %v293 = vld [vmem:[#allocation9 + $0x60] sm:$0xff]
    %v294 = vld [vmem:[#allocation9 + $0x68] sm:$0xff]
    %v295 = vld [vmem:[#allocation9 + $0x70] sm:$0xff]
    %v296 = vld [vmem:[#allocation9 + $0x78] sm:$0xff]
    %297 = vmatprep.subr.mxu0 0.0
    %298 = vmatpush1.msra.mxu0 %v281
    %299 = vmatprep.subr.mxu0 0.0
    %300 = vmatpush1.msra.mxu0 %v282
    %301 = vmatprep.subr.mxu0 0.0
    %302 = vmatpush1.msra.mxu0 %v283
    %303 = vmatprep.subr.mxu0 0.0
    %304 = vmatpush1.msra.mxu0 %v284
    %305 = vmatprep.subr.mxu0 0.0
    %306 = vmatpush1.msra.mxu0 %v285
    %307 = vmatprep.subr.mxu0 0.0
    %308 = vmatpush1.msra.mxu0 %v286
    %309 = vmatprep.subr.mxu0 0.0
    %310 = vmatpush1.msra.mxu0 %v287
    %311 = vmatprep.subr.mxu0 0.0
    %312 = vmatpush1.msra.mxu0 %v288
    %313 = vmatprep.subr.mxu0 0.0
    %314 = vmatpush1.msra.mxu0 %v289
    %315 = vmatprep.subr.mxu0 0.0
    %316 = vmatpush1.msra.mxu0 %v290
    %317 = vmatprep.subr.mxu0 0.0
    %318 = vmatpush1.msra.mxu0 %v291
    %319 = vmatprep.subr.mxu0 0.0
    %320 = vmatpush1.msra.mxu0 %v292
    %321 = vmatprep.subr.mxu0 0.0
    %322 = vmatpush1.msra.mxu0 %v293
    %323 = vmatprep.subr.mxu0 0.0
    %324 = vmatpush1.msra.mxu0 %v294
    %325 = vmatprep.subr.mxu0 0.0
    %326 = vmatpush1.msra.mxu0 %v295
    %327 = vmatprep.subr.mxu0 0.0
    %328 = vmatpush1.msra.mxu0 %v296
    %329 = vmatprep.subr.mxu0 0.0
    %330 = vmatpush1.msra.mxu0 0.0
    %331 = vmatprep.subr.mxu0 0.0
    %332 = vmatpush1.msra.mxu0 0.0
    %333 = vmatprep.subr.mxu0 0.0
    %334 = vmatpush1.msra.mxu0 0.0
    %335 = vmatprep.subr.mxu0 0.0
    %336 = vmatpush1.msra.mxu0 0.0
    %337 = vmatprep.subr.mxu0 0.0
    %338 = vmatpush1.msra.mxu0 0.0
    %339 = vmatprep.subr.mxu0 0.0
    %340 = vmatpush1.msra.mxu0 0.0
    %341 = vmatprep.subr.mxu0 0.0
    %342 = vmatpush1.msra.mxu0 0.0
    %343 = vmatprep.subr.mxu0 0.0
    %344 = vmatpush1.msra.mxu0 0.0
    %345 = vmatprep.subr.mxu0 0.0
    %346 = vmatpush1.msra.mxu0 0.0
    %347 = vmatprep.subr.mxu0 0.0
    %348 = vmatpush1.msra.mxu0 0.0
    %349 = vmatprep.subr.mxu0 0.0
    %350 = vmatpush1.msra.mxu0 0.0
    %351 = vmatprep.subr.mxu0 0.0
    %352 = vmatpush1.msra.mxu0 0.0
    %353 = vmatprep.subr.mxu0 0.0
    %354 = vmatpush1.msra.mxu0 0.0
    %355 = vmatprep.subr.mxu0 0.0
    %356 = vmatpush1.msra.mxu0 0.0
    %357 = vmatprep.subr.mxu0 0.0
    %358 = vmatpush1.msra.mxu0 0.0
    %359 = vmatprep.subr.mxu0 0.0
    %360 = vmatpush1.msra.mxu0 0.0
    %361 = vmatprep.mubr.f32.mxu0 0.0
    %362 = vmatmul.mubr.f32.gmra.mrb[0].mxu0 %v277
    %v363 = vpop.f32.mrb[0].mxu0
    %v364 = vadd.f32 0.0, %v363
    %v365 = vpop.f32.mrb[0].mxu0
    %366 = vmatprep.mubr.f32.mxu0 0.0
    %367 = vmatmul.mubr.f32.gmra.mrb[0].mxu0 %v278
    %v368 = vpop.f32.mrb[0].mxu0
    %v369 = vadd.f32 0.0, %v368
    %v370 = vpop.f32.mrb[0].mxu0
    %371 = vdwg.mxu0
    %v372 = vadd.f32 %v279, %v364
    %v373 = vadd.f32 %v280, %v369
    %374 = vst [vmem:[#allocation2] sm:$0xff] %v372
    %375 = vst [vmem:[#allocation2 + $0x8] sm:$0xff] %v373
    // Predicated region
    $region38: #{tpu_custom_call.1} parent=1 // pred_check
      %p376 = pneg %p73
    $region39: #{tpu_custom_call.1} parent=1 // pred_check_branch
      %378 = sbr.rel (%p376) target = $region41
    $region40: #{tpu_custom_call.1} parent=1 // pred_region
      %v379 = vld [vmem:[#allocation2] sm:$0xff]
      %v380 = vld [vmem:[#allocation2 + $0x8] sm:$0xff]
      %381 = vst [vmem:[#allocation11] sm:$0xff] %v379
      %382 = vst [vmem:[#allocation11 + $0x8] sm:$0xff] %v380
    $region41: #{tpu_custom_call.1} parent=1 // pred_fallthru
      _
    // Predicated region
    $region42: #{tpu_custom_call.1} parent=1 // pred_check
      _
    $region43: #{tpu_custom_call.1} parent=1 // pred_check_branch
      %384 = sbr.rel (0) target = $region45
    $region44: #{tpu_custom_call.1} parent=1 // pred_region
      %s386 = ssub.s32 256, 256
      %387 = vsyncadd [#allocation5], %s386
      %s388 = sshll.u32 [#allocation11], 4
      %s389 = int_to_ptr.vmem [resolvable:$true] %s388
      %394 = dma.vmem_to_hbm [thread:$0]  %s389, 256, %s4, [#allocation5], 128, 128, 8
    $region45: #{tpu_custom_call.1} parent=1 // pred_fallthru
      _
    // Predicated region
    $region46: #{tpu_custom_call.1} parent=1 // pred_check
      _
    $region47: #{tpu_custom_call.1} parent=1 // pred_check_branch
      %396 = sbr.rel (0) target = $region49
    $region48: #{tpu_custom_call.1} parent=1 // pred_region
      %397 = dma.done [#allocation5], 256
    $region49: #{tpu_custom_call.1} parent=1 // pred_fallthru
      _
    %398 = vsyncpa [#allocation4], 1
    %399 = vsyncpa [#allocation7], 1
    %400 = vsyncpa [#allocation10], 1
    %401 = vsyncpa [#allocation5], 1

</llo_original>
